<compile_context>
chip_gen: v5e
topology: v5e:2x2
jax: 0.10.0
libtpu: 0.0.40
codegen_flags: <defaults>
</compile_context>

<pallas_src>
import math

import jax
import jax.numpy as jnp
from jax.experimental import pallas as pl
from jax.experimental.pallas import tpu as pltpu


# ----------------------------------------------------------------------------
# Kernel 1: modal projections + fused item table, tiled over node rows.
#   img_proj = img_raw @ W_img + b_img
#   txt_proj = txt_raw @ W_txt + b_txt
#   fused    = emb + 0.1 * img_proj + 0.15 * txt_proj
#   modal    = [img_proj | txt_proj]            (lane-packed, width 2*dim)
# ----------------------------------------------------------------------------
def fuse_tables_kernel(emb_ref, img_raw_ref, txt_raw_ref,
                       wi_ref, bi_ref, wt_ref, bt_ref,
                       fused_ref, modal_ref):
    d = fused_ref.shape[1]
    # bf16 MXU inputs, f32 accumulation.
    img_p = jnp.dot(img_raw_ref[...], wi_ref[...],
                    preferred_element_type=jnp.float32) + bi_ref[...]
    txt_p = jnp.dot(txt_raw_ref[...], wt_ref[...],
                    preferred_element_type=jnp.float32) + bt_ref[...]
    fused_ref[...] = emb_ref[...] + 0.1 * img_p + 0.15 * txt_p
    # Direct slab stores (no concat temporary / cross-lane relayout).
    modal_ref[:, :d] = img_p
    modal_ref[:, d:] = txt_p


def fuse_tables(emb, img_raw, txt_raw, wi, bi, wt, bt, *,
                max_row_tile=512, vmem_budget_bytes=40 * 2**20):
    n, d = emb.shape
    ei = img_raw.shape[1]
    et = txt_raw.shape[1]

    # Row tile: whole table when small; otherwise derive from a VMEM budget
    # (double-buffered streamed operands + resident bf16 weights) so the same
    # code fits v7x's 64 MiB VMEM as well as v5e/v6e's 128 MiB.
    if n <= max_row_tile:
        tn = n
    else:
        per_row = 16 * d + 2 * (ei + et)          # emb f32 + raw bf16 + fused + modal
        resident = 2 * d * (ei + et) + 16 * d     # bf16 weights + f32 biases
        cap = max(16, (vmem_budget_bytes - resident) // (2 * per_row))
        tn = min(max_row_tile, cap)
        tn = max(16, (tn // 16) * 16)             # sublane-aligned for bf16 inputs
    grid = (pl.cdiv(n, tn),)

    # bf16 matmul operands (halves HBM read of the raw modal tables too).
    img_bf = img_raw.astype(jnp.bfloat16)
    txt_bf = txt_raw.astype(jnp.bfloat16)
    wi_bf = wi.astype(jnp.bfloat16)
    wt_bf = wt.astype(jnp.bfloat16)

    def tiled(cols):
        return pl.BlockSpec((tn, cols), lambda i: (i, 0))

    def whole(r, c):
        return pl.BlockSpec((r, c), lambda i: (0, 0))

    return pl.pallas_call(
        fuse_tables_kernel,
        out_shape=(jax.ShapeDtypeStruct((n, d), jnp.float32),
                   jax.ShapeDtypeStruct((n, 2 * d), jnp.float32)),
        grid=grid,
        in_specs=[tiled(d), tiled(ei), tiled(et),
                  whole(ei, d), whole(1, d), whole(et, d), whole(1, d)],
        out_specs=(tiled(d), tiled(2 * d)),
        compiler_params=pltpu.CompilerParams(
            dimension_semantics=("parallel",),        # megacore split on v7x
            vmem_limit_bytes=48 * 1024 * 1024),
    )(emb, img_bf, txt_bf, wi_bf, bi, wt_bf, bt)


# ----------------------------------------------------------------------------
# Kernel 2: gather + masked-mean session pooling.
# grid = (B,) ("parallel"), tables VMEM-resident (constant BlockSpec), item
# ids / mask scalar-prefetched to SMEM.  Per batch element: fori_loop over L
# doing dynamic VMEM row loads into vreg-carried accumulators, then an exact
# divide by the mask count.  Outputs pooled means s_item (B,d), s_mod (B,2d).
# ----------------------------------------------------------------------------
def gather_pool_kernel(item_sref, mask_sref, ftab_ref, mtab_ref,
                       s_item_ref, s_mod_ref):
    b = pl.program_id(0)
    seq_len = item_sref.shape[1]
    d = ftab_ref.shape[1]

    def body(l, carry):
        acc_i, acc_m, cnt = carry
        iid = item_sref[b, l]
        msk = mask_sref[b, l]
        # contribution weight: position unmasked AND item id != 0 (id 0 is the
        # zero padding row of the original (N+1, D) tables, dropped here)
        w = jnp.where(jnp.logical_and(iid > 0, msk > 0), 1.0, 0.0)
        row = jnp.maximum(iid - 1, 0)
        acc_i = acc_i + w * ftab_ref[pl.ds(row, 1), :]
        acc_m = acc_m + w * mtab_ref[pl.ds(row, 1), :]
        cnt = cnt + jnp.where(msk > 0, 1.0, 0.0)
        return acc_i, acc_m, cnt

    acc0 = (jnp.zeros((1, d), jnp.float32),
            jnp.zeros((1, 2 * d), jnp.float32),
            jnp.zeros((), jnp.float32))
    acc_i, acc_m, cnt = jax.lax.fori_loop(0, seq_len, body, acc0,
                                          unroll=(seq_len <= 16))
    inv = 1.0 / jnp.maximum(cnt, 1.0)   # exact divide (matches reference)
    s_item_ref[...] = acc_i * inv
    s_mod_ref[...] = acc_m * inv


def _gather_pool_xla(item_ids, mask, fused_table, modal_table):
    # Fallback when the tables do not fit the VMEM budget.
    # TODO(synk): replace with a streaming Pallas kernel (pl.ANY tables +
    # manual double-buffered pltpu.make_async_copy row gathers) for v7x-sized
    # tables.
    d = fused_table.shape[1]
    ft = jnp.concatenate([jnp.zeros((1, d), fused_table.dtype), fused_table], 0)
    mt = jnp.concatenate([jnp.zeros((1, 2 * d), modal_table.dtype), modal_table], 0)
    m = mask.astype(jnp.float32)[..., None]
    den = jnp.maximum(jnp.sum(m, axis=1), 1.0)
    s_item = jnp.sum(jnp.take(ft, item_ids, axis=0) * m, axis=1) / den
    s_mod = jnp.sum(jnp.take(mt, item_ids, axis=0) * m, axis=1) / den
    return s_item, s_mod


def gather_pool(item_ids, mask, fused_table, modal_table,
                *, vmem_table_budget_bytes=20 * 2**20):
    bsz, _ = item_ids.shape
    n, d = fused_table.shape

    table_bytes = 4 * (fused_table.size + modal_table.size)
    if table_bytes > vmem_table_budget_bytes:
        return _gather_pool_xla(item_ids, mask, fused_table, modal_table)

    grid_spec = pltpu.PrefetchScalarGridSpec(
        num_scalar_prefetch=2,                 # item ids, mask -> SMEM
        grid=(bsz,),
        in_specs=[
            pl.BlockSpec((n, d), lambda b, it, mk: (0, 0)),       # fused table
            pl.BlockSpec((n, 2 * d), lambda b, it, mk: (0, 0)),   # [img|txt]
        ],
        out_specs=(
            pl.BlockSpec((1, d), lambda b, it, mk: (b, 0)),
            pl.BlockSpec((1, 2 * d), lambda b, it, mk: (b, 0)),
        ),
    )
    return pl.pallas_call(
        gather_pool_kernel,
        out_shape=(jax.ShapeDtypeStruct((bsz, d), jnp.float32),
                   jax.ShapeDtypeStruct((bsz, 2 * d), jnp.float32)),
        grid_spec=grid_spec,
        compiler_params=pltpu.CompilerParams(
            dimension_semantics=("parallel",),        # per-b independent
            vmem_limit_bytes=48 * 1024 * 1024),
    )(item_ids, mask, fused_table, modal_table)


# ----------------------------------------------------------------------------
# Kernel 3: multimodal gating / 2-way softmax / separation / fusion on the
# pooled (B, d) / (B, 2d) session vectors.  Single grid step, whole arrays in
# VMEM, batch-stacked matmuls (each gate/query weight pushed once for two
# operands), 2-way softmax folded into one sigmoid.
# ----------------------------------------------------------------------------
def fusion_kernel(s_item_ref, s_mod_ref, wv_ref, bv_ref, wt_ref, bt_ref,
                  wq1_ref, bq1_ref, wq2_ref, out_ref):
    bsz, d = s_item_ref.shape
    s_item = s_item_ref[...]
    s_img = s_mod_ref[:, :d]
    s_txt = s_mod_ref[:, d:]

    def lin(x, w_ref, b_ref=None):
        y = jnp.dot(x, w_ref[...], preferred_element_type=jnp.float32)
        return y if b_ref is None else y + b_ref[...]

    gv_all = jax.nn.sigmoid(lin(jnp.concatenate([s_img, s_item], axis=0),
                                wv_ref, bv_ref))            # (2B, d)
    gt_all = jax.nn.sigmoid(lin(jnp.concatenate([s_txt, s_item], axis=0),
                                wt_ref, bt_ref))            # (2B, d)
    img_diff = s_item * gv_all[:bsz]
    txt_diff = s_item * gt_all[:bsz]

    h1 = jnp.tanh(lin(jnp.concatenate([img_diff, txt_diff], axis=0),
                      wq1_ref, bq1_ref))                    # (2B, d)
    q = lin(h1, wq2_ref)                                    # (2B, 1)
    # softmax over the two modality scores == sigmoid of their difference
    w_img = jax.nn.sigmoid(q[:bsz] - q[bsz:])
    common = w_img * img_diff + (1.0 - w_img) * txt_diff

    sep_img = img_diff - common
    sep_txt = txt_diff - common
    fusion = (gv_all[bsz:] * sep_img + gt_all[bsz:] * sep_txt + common) * (1.0 / 3.0)
    out_ref[...] = s_item + s_img + s_txt + fusion


def multimodal_fusion(s_item, s_mod, params):
    bsz, d = s_item.shape
    return pl.pallas_call(
        fusion_kernel,
        out_shape=jax.ShapeDtypeStruct((bsz, d), jnp.float32),
    )(s_item, s_mod,
      params["w_gate_v"], params["b_gate_v"],
      params["w_gate_t"], params["b_gate_t"],
      params["w_q1"], params["b_q1"], params["w_q2"])


# ----------------------------------------------------------------------------
# Parameter init (HIDE.reset_parameters: uniform(-1/sqrt(dim), 1/sqrt(dim)) on
# every parameter, which also overwrites the CSV-loaded modal embeddings —
# hence no file loading is needed).
# ----------------------------------------------------------------------------
def init_params(key, num_node, dim, img_e, txt_e):
    stdv = 1.0 / math.sqrt(dim)

    def u(k, shape):
        return jax.random.uniform(k, shape, jnp.float32, -stdv, stdv)

    ks = jax.random.split(key, 14)
    return dict(
        embedding=u(ks[0], (num_node, dim)),
        image_embedding=u(ks[1], (num_node, img_e)),
        text_embedding=u(ks[2], (num_node, txt_e)),
        w_img=u(ks[3], (img_e, dim)), b_img=u(ks[4], (1, dim)),
        w_txt=u(ks[5], (txt_e, dim)), b_txt=u(ks[6], (1, dim)),
        w_gate_v=u(ks[7], (dim, dim)), b_gate_v=u(ks[8], (1, dim)),
        w_gate_t=u(ks[9], (dim, dim)), b_gate_t=u(ks[10], (1, dim)),
        w_q1=u(ks[11], (dim, dim)), b_q1=u(ks[12], (1, dim)),
        w_q2=u(ks[13], (dim, 1)),
    )


# ----------------------------------------------------------------------------
# HIDE.forward
# ----------------------------------------------------------------------------
def hide_forward(params, inputs, Hs, mask_item, item):
    _, dim = params["embedding"].shape

    # (1) modal projections + fused item table (Pallas, tiled over node rows)
    fused, modal = fuse_tables(
        params["embedding"], params["image_embedding"], params["text_embedding"],
        params["w_img"], params["b_img"], params["w_txt"], params["b_txt"])

    # (n+1, dim) item table with the zero pad row (module's returned table and
    # the `h` gather need it).
    # TODO(synk): fold this pad row into kernel 1's output to avoid the extra
    # full-table HBM copy of the XLA concat.
    item_table = jnp.concatenate([jnp.zeros((1, dim), jnp.float32), fused], axis=0)

    # (2) gather + masked-mean pooling (Pallas, grid over batch)
    item_ids = item.astype(jnp.int32)
    mask_i = mask_item.astype(jnp.int32)
    s_item, s_mod = gather_pool(item_ids, mask_i, fused, modal)

    # (3) multimodal gating / softmax / fusion (Pallas, single step)
    session_diff = multimodal_fusion(s_item, s_mod, params)

    # gather of the session input sequence (plain JAX glue)
    h = jnp.take(item_table, inputs, axis=0)
    # TODO(synk): LocalHyperGATlayer (self.local_agg) is not defined in the
    # reference source; its output is replaced by the gathered node embeddings
    # h (session_diff[:, None, :] and Hs would be its other inputs).
    h_local_diff = h
    del Hs

    total_loss = 0
    output = h_local_diff
    # session_diff additionally returned so the fused Pallas path is
    # observable / validated (the original feeds it only to local_agg).
    return output, item_table, total_loss, session_diff


# ----------------------------------------------------------------------------
# Pure-JAX reference of the same forward pass (for validation only).
# ----------------------------------------------------------------------------
def hide_reference(params, inputs, mask_item, item):
    hp = lambda a, b: jnp.dot(a, b, precision=jax.lax.Precision.HIGHEST)
    dim = params["embedding"].shape[1]
    img_p = hp(params["image_embedding"], params["w_img"]) + params["b_img"]
    txt_p = hp(params["text_embedding"], params["w_txt"]) + params["b_txt"]
    fused = params["embedding"] + 0.1 * img_p + 0.15 * txt_p
    zeros = jnp.zeros((1, dim), jnp.float32)
    item_table = jnp.concatenate([zeros, fused], axis=0)
    img_table = jnp.concatenate([zeros, img_p], axis=0)
    txt_table = jnp.concatenate([zeros, txt_p], axis=0)

    m = mask_item.astype(jnp.float32)[..., None]
    den = jnp.maximum(jnp.sum(m, axis=1), 1.0)
    s_item = jnp.sum(item_table[item] * m, axis=1) / den
    s_img = jnp.sum(img_table[item] * m, axis=1) / den
    s_txt = jnp.sum(txt_table[item] * m, axis=1) / den

    gate = lambda x, w, b: jax.nn.sigmoid(hp(x, w) + b)
    img_diff = s_item * gate(s_img, params["w_gate_v"], params["b_gate_v"])
    txt_diff = s_item * gate(s_txt, params["w_gate_t"], params["b_gate_t"])
    qc = lambda x: hp(jnp.tanh(hp(x, params["w_q1"]) + params["b_q1"]),
                      params["w_q2"])
    wgt = jax.nn.softmax(jnp.concatenate([qc(img_diff), qc(txt_diff)], -1), -1)
    common = wgt[:, :1] * img_diff + wgt[:, 1:] * txt_diff
    sep_i = img_diff - common
    sep_t = txt_diff - common
    gv = gate(s_item, params["w_gate_v"], params["b_gate_v"])
    gt = gate(s_item, params["w_gate_t"], params["b_gate_t"])
    fusion = (gv * sep_i + gt * sep_t + common) / 3.0
    session_diff = s_item + s_img + s_txt + fusion
    h = item_table[inputs]
    return h, item_table, session_diff


if __name__ == "__main__":
    key = jax.random.PRNGKey(0)
    num_node, dim, img_e, txt_e = 12, 32, 24, 20
    B, L = 2, 8

    pkey, k_item, k_inp = jax.random.split(key, 3)
    params = init_params(pkey, num_node, dim, img_e, txt_e)

    # session item ids (0 == padding row of the (N+1, D) tables)
    item = jax.random.randint(k_item, (B, L), 0, num_node + 1)
    inputs = jax.random.randint(k_inp, (B, L), 0, num_node + 1)
    lens = jnp.array([5, 8])
    mask_item = (jnp.arange(L)[None, :] < lens[:, None]).astype(jnp.int32)
    Hs = jnp.zeros((B, L, L), jnp.float32)   # hypergraph incidence (unused)

    output, item_table, total_loss, session_diff = hide_forward(
        params, inputs, Hs, mask_item, item)
    jax.block_until_ready((output, item_table, session_diff))

    assert output.shape == (B, L, dim)
    assert item_table.shape == (num_node + 1, dim)
    assert session_diff.shape == (B, dim)

    # numerics check against the pure-JAX reference
    ref_h, ref_table, ref_sd = hide_reference(params, inputs, mask_item, item)
    tol = 2e-2
    assert float(jnp.max(jnp.abs(item_table - ref_table))) < tol
    assert float(jnp.max(jnp.abs(output - ref_h))) < tol
    assert float(jnp.max(jnp.abs(session_diff - ref_sd))) < tol

    print("KERNEL_OK")
</pallas_src>

<mosaic_0001>
module attributes {stable_mosaic.version = 11 : i64} {
  func.func @fuse_tables_kernel(%arg0: i32, %arg1: memref<12x32xf32, #tpu.memory_space<vmem>>, %arg2: memref<12x24xbf16, #tpu.memory_space<vmem>>, %arg3: memref<12x20xbf16, #tpu.memory_space<vmem>>, %arg4: memref<24x32xbf16, #tpu.memory_space<vmem>>, %arg5: memref<1x32xf32, #tpu.memory_space<vmem>>, %arg6: memref<20x32xbf16, #tpu.memory_space<vmem>>, %arg7: memref<1x32xf32, #tpu.memory_space<vmem>>, %arg8: memref<12x32xf32, #tpu.memory_space<vmem>>, %arg9: memref<12x64xf32, #tpu.memory_space<vmem>>) attributes {dimension_semantics = [#tpu.dimension_semantics<parallel>], iteration_bounds = array<i64: 1>, scalar_prefetch = 0 : i64, scratch_operands = 0 : i64, tpu.core_type = #tpu.core_type<tc>, window_params = [{transform_indices = @transform_0, window_bounds = array<i64: 12, 32>}, {transform_indices = @transform_1, window_bounds = array<i64: 12, 24>}, {transform_indices = @transform_2, window_bounds = array<i64: 12, 20>}, {pipeline_mode = #tpu.pipeline_mode<synchronous>, transform_indices = @transform_3, window_bounds = array<i64: 24, 32>}, {pipeline_mode = #tpu.pipeline_mode<synchronous>, transform_indices = @transform_4, window_bounds = array<i64: 1, 32>}, {pipeline_mode = #tpu.pipeline_mode<synchronous>, transform_indices = @transform_5, window_bounds = array<i64: 20, 32>}, {pipeline_mode = #tpu.pipeline_mode<synchronous>, transform_indices = @transform_6, window_bounds = array<i64: 1, 32>}, {transform_indices = @transform_7, window_bounds = array<i64: 12, 32>}, {transform_indices = @transform_8, window_bounds = array<i64: 12, 64>}]} {
    %c0 = arith.constant 0 : index
    %c0_0 = arith.constant 0 : index
    %0 = vector.load %arg2[%c0, %c0_0] : memref<12x24xbf16, #tpu.memory_space<vmem>>, vector<12x24xbf16>
    %c0_1 = arith.constant 0 : index
    %c0_2 = arith.constant 0 : index
    %1 = vector.load %arg4[%c0_1, %c0_2] : memref<24x32xbf16, #tpu.memory_space<vmem>>, vector<24x32xbf16>
    %cst = arith.constant dense<0.000000e+00> : vector<12x32xf32>
    %2 = tpu.matmul %0, %1, %cst {dimension_numbers = #tpu.dot_dimension_numbers<[1], [0], [0], [1], [0, 0, 1, 1], [], []>} : vector<12x24xbf16>, vector<24x32xbf16>, vector<12x32xf32> -> vector<12x32xf32>
    %c0_3 = arith.constant 0 : index
    %c0_4 = arith.constant 0 : index
    %3 = vector.load %arg5[%c0_3, %c0_4] : memref<1x32xf32, #tpu.memory_space<vmem>>, vector<1x32xf32>
    %4 = vector.broadcast %3 : vector<1x32xf32> to vector<12x32xf32>
    %5 = arith.addf %2, %4 : vector<12x32xf32>
    %c0_5 = arith.constant 0 : index
    %c0_6 = arith.constant 0 : index
    %6 = vector.load %arg3[%c0_5, %c0_6] : memref<12x20xbf16, #tpu.memory_space<vmem>>, vector<12x20xbf16>
    %c0_7 = arith.constant 0 : index
    %c0_8 = arith.constant 0 : index
    %7 = vector.load %arg6[%c0_7, %c0_8] : memref<20x32xbf16, #tpu.memory_space<vmem>>, vector<20x32xbf16>
    %cst_9 = arith.constant dense<0.000000e+00> : vector<12x32xf32>
    %8 = tpu.matmul %6, %7, %cst_9 {dimension_numbers = #tpu.dot_dimension_numbers<[1], [0], [0], [1], [0, 0, 1, 1], [], []>} : vector<12x20xbf16>, vector<20x32xbf16>, vector<12x32xf32> -> vector<12x32xf32>
    %c0_10 = arith.constant 0 : index
    %c0_11 = arith.constant 0 : index
    %9 = vector.load %arg7[%c0_10, %c0_11] : memref<1x32xf32, #tpu.memory_space<vmem>>, vector<1x32xf32>
    %10 = vector.broadcast %9 : vector<1x32xf32> to vector<12x32xf32>
    %11 = arith.addf %8, %10 : vector<12x32xf32>
    %c0_12 = arith.constant 0 : index
    %c0_13 = arith.constant 0 : index
    %12 = vector.load %arg1[%c0_12, %c0_13] : memref<12x32xf32, #tpu.memory_space<vmem>>, vector<12x32xf32>
    %cst_14 = arith.constant 1.000000e-01 : f32
    %13 = vector.broadcast %cst_14 : f32 to vector<12x32xf32>
    %14 = arith.mulf %13, %5 : vector<12x32xf32>
    %15 = arith.addf %12, %14 : vector<12x32xf32>
    %cst_15 = arith.constant 1.500000e-01 : f32
    %16 = vector.broadcast %cst_15 : f32 to vector<12x32xf32>
    %17 = arith.mulf %16, %11 : vector<12x32xf32>
    %18 = arith.addf %15, %17 : vector<12x32xf32>
    %c0_16 = arith.constant 0 : index
    %c0_17 = arith.constant 0 : index
    %19 = vector.load %arg8[%c0_16, %c0_17] : memref<12x32xf32, #tpu.memory_space<vmem>>, vector<12x32xf32>
    tpu.vector_store %arg8[%c0_16, %c0_17], %18 {strides = array<i32>} : memref<12x32xf32, #tpu.memory_space<vmem>>, vector<12x32xf32>,
    %c0_18 = arith.constant 0 : index
    %c0_19 = arith.constant 0 : index
    %20 = vector.load %arg9[%c0_18, %c0_19] : memref<12x64xf32, #tpu.memory_space<vmem>>, vector<12x32xf32>
    tpu.vector_store %arg9[%c0_18, %c0_19], %5 {strides = array<i32>} : memref<12x64xf32, #tpu.memory_space<vmem>>, vector<12x32xf32>,
    %c0_20 = arith.constant 0 : index
    %c32 = arith.constant 32 : index
    %21 = vector.load %arg9[%c0_20, %c32] : memref<12x64xf32, #tpu.memory_space<vmem>>, vector<12x32xf32>
    tpu.vector_store %arg9[%c0_20, %c32], %11 {strides = array<i32>} : memref<12x64xf32, #tpu.memory_space<vmem>>, vector<12x32xf32>,
    return
  }
  func.func @transform_0(%arg0: i32) -> (i32, i32) {
    %c0_i32 = arith.constant 0 : i32
    %c0_i32_0 = arith.constant 0 : i32
    return %arg0, %c0_i32 : i32, i32
  }
  func.func @transform_1(%arg0: i32) -> (i32, i32) {
    %c0_i32 = arith.constant 0 : i32
    %c0_i32_0 = arith.constant 0 : i32
    return %arg0, %c0_i32 : i32, i32
  }
  func.func @transform_2(%arg0: i32) -> (i32, i32) {
    %c0_i32 = arith.constant 0 : i32
    %c0_i32_0 = arith.constant 0 : i32
    return %arg0, %c0_i32 : i32, i32
  }
  func.func @transform_3(%arg0: i32) -> (i32, i32) {
    %c0_i32 = arith.constant 0 : i32
    %c0_i32_0 = arith.constant 0 : i32
    %c0_i32_1 = arith.constant 0 : i32
    return %c0_i32, %c0_i32_0 : i32, i32
  }
  func.func @transform_4(%arg0: i32) -> (i32, i32) {
    %c0_i32 = arith.constant 0 : i32
    %c0_i32_0 = arith.constant 0 : i32
    %c0_i32_1 = arith.constant 0 : i32
    return %c0_i32, %c0_i32_0 : i32, i32
  }
  func.func @transform_5(%arg0: i32) -> (i32, i32) {
    %c0_i32 = arith.constant 0 : i32
    %c0_i32_0 = arith.constant 0 : i32
    %c0_i32_1 = arith.constant 0 : i32
    return %c0_i32, %c0_i32_0 : i32, i32
  }
  func.func @transform_6(%arg0: i32) -> (i32, i32) {
    %c0_i32 = arith.constant 0 : i32
    %c0_i32_0 = arith.constant 0 : i32
    %c0_i32_1 = arith.constant 0 : i32
    return %c0_i32, %c0_i32_0 : i32, i32
  }
  func.func @transform_7(%arg0: i32) -> (i32, i32) {
    %c0_i32 = arith.constant 0 : i32
    %c0_i32_0 = arith.constant 0 : i32
    return %arg0, %c0_i32 : i32, i32
  }
  func.func @transform_8(%arg0: i32) -> (i32, i32) {
    %c0_i32 = arith.constant 0 : i32
    %c0_i32_0 = arith.constant 0 : i32
    return %arg0, %c0_i32 : i32, i32
  }
}

</mosaic_0001>

<llo_original>
// kernel: tpu_custom_call.1
$region0: #{tpu_custom_call.1}
  #allocation0 [shape = 'u32[]', space=smem, size = 0x4, offset = 0x4, fixed_abs, tag = 'smem constant byte address 0x4 - core index']
  #allocation1 [shape = 'u32[72,128]{1,0:T(1,128)}', space=vmem, size = 0x9000, scoped, tag = 'internal scratch']
  %s0 = inlined_call_operand.hbm [shape: f32[12,32], index: 0, kind: input, shape index: {}]
  %s1 = inlined_call_operand.hbm [shape: bf16[12,24], index: 1, kind: input, shape index: {}]
  %s2 = inlined_call_operand.hbm [shape: bf16[12,20], index: 2, kind: input, shape index: {}]
  %s3 = inlined_call_operand.hbm [shape: bf16[24,32], index: 3, kind: input, shape index: {}]
  %s4 = inlined_call_operand.vmem [shape: f32[1,32], index: 4, kind: input, shape index: {}]
  %s5 = inlined_call_operand.hbm [shape: bf16[20,32], index: 5, kind: input, shape index: {}]
  %s6 = inlined_call_operand.vmem [shape: f32[1,32], index: 6, kind: input, shape index: {}]
  %s7 = inlined_call_operand.hbm [shape: f32[12,32], index: 7, kind: output, shape index: {0}]
  %s8 = inlined_call_operand.hbm [shape: f32[12,64], index: 8, kind: output, shape index: {1}]
  %9 = xla_tuple %s7, %s8
  %s10 = sld [smem:[#allocation0]]
  $region66: #{tpu_custom_call.1} parent=0
    _
  %s12 = ssub.s32 1, %s10
  %s13 = scalar_select 0, %s12, %s10
  $region1: #{tpu_custom_call.1} parent=0
    #allocation2 [shape = 'u8[8192]{0}', space=vmem, size = 0x2000, scoped, tag = 'input window, operand 0, single buffered']
    #allocation3 [shape = 's32[1]{0}', space=sflag, size = 0x4, scoped, tag = 'scoped memory for tpu_custom_call.1']
    #allocation4 [shape = 's32[1]{0}', space=sflag, size = 0x4, scoped, tag = 'scoped memory for tpu_custom_call.1']
    #allocation5 [shape = 'u8[4096]{0}', space=vmem, size = 0x1000, scoped, tag = 'input window, operand 1, single buffered']
    #allocation6 [shape = 's32[1]{0}', space=sflag, size = 0x4, scoped, tag = 'scoped memory for tpu_custom_call.1']
    #allocation7 [shape = 'u8[4096]{0}', space=vmem, size = 0x1000, scoped, tag = 'input window, operand 2, single buffered']
    #allocation8 [shape = 'u8[6144]{0}', space=vmem, size = 0x1800, scoped, tag = 'input window, operand 3, single buffered']
    #allocation9 [shape = 's32[1]{0}', space=sflag, size = 0x4, scoped, tag = 'scoped memory for tpu_custom_call.1']
    #allocation10 [shape = 'u8[6144]{0}', space=vmem, size = 0x1800, scoped, tag = 'input window, operand 5, single buffered']
    #allocation11 [shape = 'u8[8192]{0}', space=vmem, size = 0x2000, scoped, tag = 'output window, operand 0, single buffered']
    #allocation12 [shape = 'u8[8192]{0}', space=vmem, size = 0x2000, scoped, tag = 'output window, operand 1, single buffered']
    #allocation13 [shape = 's32[1]{0}', space=sflag, size = 0x4, scoped, tag = 'scoped memory for tpu_custom_call.1']
    %14 = vsyncpa [#allocation3], 0
    %15 = vsyncpa [#allocation6], 0
    %16 = vsyncpa [#allocation9], 0
    %17 = vsyncpa [#allocation4], 0
    %18 = vsyncpa [#allocation13], 0
    // Predicated region
    $region2: #{tpu_custom_call.1} parent=1 // pred_check
      _
    $region3: #{tpu_custom_call.1} parent=1 // pred_check_branch
      %20 = sbr.rel (0) target = $region5
    $region4: #{tpu_custom_call.1} parent=1 // pred_region
      %22 = vsyncadd [#allocation3], 0
      %s23 = sshll.u32 %s0, 4
      %s24 = int_to_ptr.hbm [resolvable:$true] %s23
      %s25 = sshll.u32 [#allocation2], 4
      %s26 = int_to_ptr.vmem [resolvable:$true] %s25
      %31 = dma.hbm_to_vmem [thread:$0]  %s24, 256, %s26, [#allocation3], 128, 128, 8
    $region5: #{tpu_custom_call.1} parent=1 // pred_fallthru
      _
    // Predicated region
    $region6: #{tpu_custom_call.1} parent=1 // pred_check
      _
    $region7: #{tpu_custom_call.1} parent=1 // pred_check_branch
      %33 = sbr.rel (0) target = $region9
    $region8: #{tpu_custom_call.1} parent=1 // pred_region
      %35 = vsyncadd [#allocation6], 0
      %s36 = sshll.u32 %s1, 4
      %s37 = int_to_ptr.hbm [resolvable:$true] %s36
      %s38 = sshll.u32 [#allocation5], 4
      %s39 = int_to_ptr.vmem [resolvable:$true] %s38
      %44 = dma.hbm_to_vmem [thread:$0]  %s37, 128, %s39, [#allocation6], 64, 64, 4
    $region9: #{tpu_custom_call.1} parent=1 // pred_fallthru
      _
    // Predicated region
    $region10: #{tpu_custom_call.1} parent=1 // pred_check
      _
    $region11: #{tpu_custom_call.1} parent=1 // pred_check_branch
      %46 = sbr.rel (0) target = $region13
    $region12: #{tpu_custom_call.1} parent=1 // pred_region
      %48 = vsyncadd [#allocation6], 0
      %s49 = sshll.u32 %s2, 4
      %s50 = int_to_ptr.hbm [resolvable:$true] %s49
      %s51 = sshll.u32 [#allocation7], 4
      %s52 = int_to_ptr.vmem [resolvable:$true] %s51
      %57 = dma.hbm_to_vmem [thread:$0]  %s50, 128, %s52, [#allocation6], 64, 64, 4
    $region13: #{tpu_custom_call.1} parent=1 // pred_fallthru
      _
    // Predicated region
    $region14: #{tpu_custom_call.1} parent=1 // pred_check
      _
    $region15: #{tpu_custom_call.1} parent=1 // pred_check_branch
      %59 = sbr.rel (0) target = $region17
    $region16: #{tpu_custom_call.1} parent=1 // pred_region
      %61 = vsyncadd [#allocation9], 0
      %s62 = sshll.u32 %s3, 4
      %s63 = int_to_ptr.hbm [resolvable:$true] %s62
      %s64 = sshll.u32 [#allocation8], 4
      %s65 = int_to_ptr.vmem [resolvable:$true] %s64
      %70 = dma.hbm_to_vmem [thread:$0]  %s63, 192, %s65, [#allocation9], 64, 64, 4
    $region17: #{tpu_custom_call.1} parent=1 // pred_fallthru
      _
    // Predicated region
    $region18: #{tpu_custom_call.1} parent=1 // pred_check
      _
    $region19: #{tpu_custom_call.1} parent=1 // pred_check_branch
      %72 = sbr.rel (0) target = $region21
    $region20: #{tpu_custom_call.1} parent=1 // pred_region
      _
    $region21: #{tpu_custom_call.1} parent=1 // pred_fallthru
      _
    // Predicated region
    $region22: #{tpu_custom_call.1} parent=1 // pred_check
      _
    $region23: #{tpu_custom_call.1} parent=1 // pred_check_branch
      %74 = sbr.rel (0) target = $region25
    $region24: #{tpu_custom_call.1} parent=1 // pred_region
      %76 = vsyncadd [#allocation9], 0
      %s77 = sshll.u32 %s5, 4
      %s78 = int_to_ptr.hbm [resolvable:$true] %s77
      %s79 = sshll.u32 [#allocation10], 4
      %s80 = int_to_ptr.vmem [resolvable:$true] %s79
      %85 = dma.hbm_to_vmem [thread:$0]  %s78, 192, %s80, [#allocation9], 64, 64, 4
    $region25: #{tpu_custom_call.1} parent=1 // pred_fallthru
      _
    // Predicated region
    $region26: #{tpu_custom_call.1} parent=1 // pred_check
      _
    $region27: #{tpu_custom_call.1} parent=1 // pred_check_branch
      %87 = sbr.rel (0) target = $region29
    $region28: #{tpu_custom_call.1} parent=1 // pred_region
      _
    $region29: #{tpu_custom_call.1} parent=1 // pred_fallthru
      _
    // Predicated region
    $region30: #{tpu_custom_call.1} parent=1 // pred_check
      _
    $region31: #{tpu_custom_call.1} parent=1 // pred_check_branch
      %89 = sbr.rel (0) target = $region33
    $region32: #{tpu_custom_call.1} parent=1 // pred_region
      %91 = dma.done [#allocation3], 256
    $region33: #{tpu_custom_call.1} parent=1 // pred_fallthru
      _
    // Predicated region
    $region34: #{tpu_custom_call.1} parent=1 // pred_check
      _
    $region35: #{tpu_custom_call.1} parent=1 // pred_check_branch
      %93 = sbr.rel (0) target = $region37
    $region36: #{tpu_custom_call.1} parent=1 // pred_region
      %95 = dma.done [#allocation6], 128
    $region37: #{tpu_custom_call.1} parent=1 // pred_fallthru
      _
    // Predicated region
    $region38: #{tpu_custom_call.1} parent=1 // pred_check
      _
    $region39: #{tpu_custom_call.1} parent=1 // pred_check_branch
      %97 = sbr.rel (0) target = $region41
    $region40: #{tpu_custom_call.1} parent=1 // pred_region
      %99 = dma.done [#allocation6], 128
    $region41: #{tpu_custom_call.1} parent=1 // pred_fallthru
      _
    // Predicated region
    $region42: #{tpu_custom_call.1} parent=1 // pred_check
      _
    $region43: #{tpu_custom_call.1} parent=1 // pred_check_branch
      %101 = sbr.rel (0) target = $region45
    $region44: #{tpu_custom_call.1} parent=1 // pred_region
      %103 = dma.done [#allocation9], 192
    $region45: #{tpu_custom_call.1} parent=1 // pred_fallthru
      _
    // Predicated region
    $region46: #{tpu_custom_call.1} parent=1 // pred_check
      _
    $region47: #{tpu_custom_call.1} parent=1 // pred_check_branch
      %105 = sbr.rel (0) target = $region49
    $region48: #{tpu_custom_call.1} parent=1 // pred_region
      %107 = dma.done [#allocation9], 192
    $region49: #{tpu_custom_call.1} parent=1 // pred_fallthru
      _
    %v109 = vld [vmem:[#allocation5] sm:$0xf]
    %v110 = vld [vmem:[#allocation5 + $0x4] sm:$0x3]
    %v111 = vld [vmem:[#allocation8] sm:$0xf]
    %v112 = vld [vmem:[#allocation8 + $0x4] sm:$0xf]
    %v113 = vld [vmem:[#allocation8 + $0x8] sm:$0xf]
    %v114 = vld [vmem:[%s4] sm:$0x1]
    %v116 = vperm.slane %v114, 0
    %v120 = vunpack.c.l.b16 %v109
    %v121 = vunpack.c.l.b16 %v110
    %v122 = vpack.c.b16 %v121, %v120
    %v126 = vunpack.c.l.b16 %v111
    %v127 = vunpack.c.l.b16 %v112
    %v128 = vunpack.c.l.b16 %v113
    %v129 = vpack.c.b16 %v127, %v126
    %v130 = vpack.c.b16 %v128, %v128
    %vm132 = vcmask 195584
    %v134 = vsel %vm132, %v122, 0
    %vm136 = vcmask 1043456
    %v138 = vsel %vm136, %v130, 0
    %140 = vmatpush.bf16.msra.mxu0 0
    %141 = vmatpush.bf16.msra.mxu0 0
    %142 = vmatpush.bf16.msra.mxu0 0
    %143 = vmatpush.bf16.msra.mxu0 0
    %144 = vmatpush.bf16.msra.mxu0 0
    %145 = vmatpush.bf16.msra.mxu0 0
    %146 = vmatpush.bf16.msra.mxu0 %v138
    %147 = vmatpush.bf16.msra.mxu0 %v129
    %148 = vmatmul.bf16.gmra.mxu0 %v134
    %v149 = vpop.f32.mrf.mxu0
    %v150 = vadd.f32 %v116, %v149
    %v151 = vpop.f32.mrf.mxu0
    %v152 = vadd.f32 %v116, %v151
    %153 = vdwg.mxu0
    %v154 = vld [vmem:[#allocation7] sm:$0xf]
    %v155 = vld [vmem:[#allocation7 + $0x4] sm:$0x3]
    %v156 = vld [vmem:[#allocation10] sm:$0xf]
    %v157 = vld [vmem:[#allocation10 + $0x4] sm:$0xf]
    %v158 = vld [vmem:[#allocation10 + $0x8] sm:$0x3]
    %v159 = vld [vmem:[%s6] sm:$0x1]
    %v161 = vperm.slane %v159, 0
    %v165 = vunpack.c.l.b16 %v154
    %v166 = vunpack.c.l.b16 %v155
    %v167 = vpack.c.b16 %v166, %v165
    %v171 = vunpack.c.l.b16 %v156
    %v172 = vunpack.c.l.b16 %v157
    %v173 = vunpack.c.l.b16 %v158
    %v174 = vpack.c.b16 %v172, %v171
    %v175 = vpack.c.b16 %v173, %v173
    %vm177 = vcmask 162816
    %v179 = vsel %vm177, %v167, 0
    %vm181 = vcmask 1041408
    %v183 = vsel %vm181, %v175, 0
    %185 = vmatpush.bf16.msra.mxu0 0
    %186 = vmatpush.bf16.msra.mxu0 0
    %187 = vmatpush.bf16.msra.mxu0 0
    %188 = vmatpush.bf16.msra.mxu0 0
    %189 = vmatpush.bf16.msra.mxu0 0
    %190 = vmatpush.bf16.msra.mxu0 0
    %191 = vmatpush.bf16.msra.mxu0 %v183
    %192 = vmatpush.bf16.msra.mxu0 %v174
    %193 = vmatmul.bf16.gmra.mxu0 %v179
    %v194 = vpop.f32.mrf.mxu0
    %v195 = vadd.f32 %v161, %v194
    %v196 = vpop.f32.mrf.mxu0
    %v197 = vadd.f32 %v161, %v196
    %198 = vdwg.mxu0
    %v199 = vld [vmem:[#allocation2] sm:$0xff]
    %v200 = vld [vmem:[#allocation2 + $0x8] sm:$0xf]
    %v201 = vmul.f32 %v150, 0.1
    %v202 = vmul.f32 %v152, 0.1
    %v203 = vadd.f32 %v199, %v201
    %v204 = vadd.f32 %v200, %v202
    %v205 = vmul.f32 %v195, 0.15
    %v206 = vmul.f32 %v197, 0.15
    %v207 = vadd.f32 %v203, %v205
    %v208 = vadd.f32 %v204, %v206
    %vm209 = vcmask 261120
    %210 = vst.msk [vmem:[#allocation11] sm:$0xff] %vm209, %v207
    %vm211 = vcmask 257024
    %212 = vst.msk [vmem:[#allocation11 + $0x8] sm:$0xf] %vm211, %v208
    %213 = vst.msk [vmem:[#allocation12] sm:$0xff] %vm209, %v150
    %214 = vst.msk [vmem:[#allocation12 + $0x8] sm:$0xf] %vm211, %v152
    %217 = vrot.lane.b32.xlu0 %v195, 32
    %v218 = vpop.permute.xlu0 %217
    %219 = vrot.lane.b32.xlu0 %v197, 32
    %v220 = vpop.permute.xlu0 %219
    %vm223 = vcmask 523520
    %224 = vst.msk [vmem:[#allocation12] sm:$0xff] %vm223, %v218
    %vm225 = vcmask 519424
    %226 = vst.msk [vmem:[#allocation12 + $0x8] sm:$0xf] %vm225, %v220
    // Predicated region
    $region50: #{tpu_custom_call.1} parent=1 // pred_check
      _
    $region51: #{tpu_custom_call.1} parent=1 // pred_check_branch
      %228 = sbr.rel (0) target = $region53
    $region52: #{tpu_custom_call.1} parent=1 // pred_region
      %230 = vsyncadd [#allocation4], 0
      %s231 = sshll.u32 [#allocation11], 4
      %s232 = int_to_ptr.vmem [resolvable:$true] %s231
      %s233 = sshll.u32 %s7, 4
      %s234 = int_to_ptr.hbm [resolvable:$true] %s233
      %239 = dma.vmem_to_hbm [thread:$0]  %s232, 256, %s234, [#allocation4], 128, 128, 8
    $region53: #{tpu_custom_call.1} parent=1 // pred_fallthru
      _
    // Predicated region
    $region54: #{tpu_custom_call.1} parent=1 // pred_check
      _
    $region55: #{tpu_custom_call.1} parent=1 // pred_check_branch
      %241 = sbr.rel (0) target = $region57
    $region56: #{tpu_custom_call.1} parent=1 // pred_region
      %243 = vsyncadd [#allocation13], 0
      %s244 = sshll.u32 [#allocation12], 4
      %s245 = int_to_ptr.vmem [resolvable:$true] %s244
      %s246 = sshll.u32 %s8, 4
      %s247 = int_to_ptr.hbm [resolvable:$true] %s246
      %252 = dma.vmem_to_hbm [thread:$0]  %s245, 256, %s247, [#allocation13], 128, 128, 8
    $region57: #{tpu_custom_call.1} parent=1 // pred_fallthru
      _
    // Predicated region
    $region58: #{tpu_custom_call.1} parent=1 // pred_check
      _
    $region59: #{tpu_custom_call.1} parent=1 // pred_check_branch
      %254 = sbr.rel (0) target = $region61
    $region60: #{tpu_custom_call.1} parent=1 // pred_region
      %256 = dma.done [#allocation4], 256
    $region61: #{tpu_custom_call.1} parent=1 // pred_fallthru
      _
    // Predicated region
    $region62: #{tpu_custom_call.1} parent=1 // pred_check
      _
    $region63: #{tpu_custom_call.1} parent=1 // pred_check_branch
      %258 = sbr.rel (0) target = $region65
    $region64: #{tpu_custom_call.1} parent=1 // pred_region
      %260 = dma.done [#allocation13], 256
    $region65: #{tpu_custom_call.1} parent=1 // pred_fallthru
      _
    %261 = vsyncpa [#allocation3], 1
    %262 = vsyncpa [#allocation6], 1
    %263 = vsyncpa [#allocation9], 1
    %264 = vsyncpa [#allocation4], 1
    %265 = vsyncpa [#allocation13], 1

</llo_original>
